<compile_context>
chip_gen: v7x
topology: tpu7x:2x2x1
jax: 0.10.0
libtpu: 0.0.40
codegen_flags: <defaults>
</compile_context>

<pallas_src>
import jax
import jax.numpy as jnp
from jax.experimental import pallas as pl
from jax.experimental.pallas import tpu as pltpu

HIDDEN = 40      # logical hidden width (nn.Linear(1, 40))
HIDDEN_PAD = 48  # padded along sublanes (multiple of 8 f32 / 16 bf16 rows)


def _round_up(n, m):
    return ((n + m - 1) // m) * m


def _mlp_kernel(x_ref, w1_ref, b1_ref, w2_ref, b2_ref, w3_ref, b3_ref, o_ref):
    x = x_ref[...]                                                 # (1, BT) f32

    # Layer 1 (K=1): VPU broadcast outer-product, hidden on sublanes.
    h1 = jnp.maximum(w1_ref[...] * x + b1_ref[...], 0.0)          # (48, BT) f32

    # Layer 2: the only real matmul -> MXU, bf16 operands (default), f32 accum.
    h2 = jnp.dot(w2_ref[...], h1.astype(w2_ref.dtype),
                 preferred_element_type=jnp.float32)               # (48, BT) f32
    h2 = jnp.maximum(h2 + b2_ref[...], 0.0)

    # Layer 3 (N=1): VPU multiply + 48-row sublane reduce (no MXU, no lane XLU).
    y = jnp.sum(h2 * w3_ref[...], axis=0, keepdims=True) + b3_ref[0, 0]
    o_ref[...] = y.astype(o_ref.dtype)                             # (1, BT)


def _pack_params(p, matmul_dtype):
    """Transpose to (hidden, ...) layout and zero-pad hidden 40 -> 48."""
    pad = HIDDEN_PAD - HIDDEN
    w1 = jnp.pad(p["w1"].T, ((0, pad), (0, 0)))                    # (48, 1)
    b1 = jnp.pad(p["b1"].T, ((0, pad), (0, 0)))                    # (48, 1)
    # Kernel computes h2 = W2^T @ h1, so pass the transposed layer-2 weight.
    w2t = jnp.pad(p["w2"].T, ((0, pad), (0, pad))).astype(matmul_dtype)  # (48,48)
    b2 = jnp.pad(p["b2"].T, ((0, pad), (0, 0)))                    # (48, 1)
    w3 = jnp.pad(p["w3"], ((0, pad), (0, 0)))                      # (48, 1)
    b3 = p["b3"].reshape(1, 1)                                     # (1, 1) -> SMEM
    return w1, b1, w2t, b2, w3, b3


def _choose_bt(B, block_batch):
    """Lane-dense batch tile: multiple of 128; >= 2 grid steps when the batch
    allows, so the 'parallel' axis can shard over v7x's two TensorCores."""
    bt_full = _round_up(B, 128)
    if bt_full <= 128:
        return 128
    bt_half = _round_up((B + 1) // 2, 128)
    return max(128, min(block_batch, bt_half, bt_full))


def sine_model_forward(x, params, *, block_batch=8192, matmul_dtype=jnp.bfloat16):
    """x: (B, 1) float32. params: logical (in, out)-layout dict from init_params."""
    w1, b1, w2t, b2, w3, b3 = _pack_params(params, matmul_dtype)

    B = x.shape[0]
    block_batch = max(128, _round_up(block_batch, 128))
    BT = _choose_bt(B, block_batch)
    B_pad = _round_up(B, BT)
    if B_pad != B:
        x = jnp.pad(x, ((0, B_pad - B), (0, 0)))
    x_row = x.reshape(1, B_pad)            # lane-dense batch row (no data movement)
    grid = (B_pad // BT,)

    const2 = lambda i: (0, 0)   # weights/biases: same block every step (VMEM-resident)

    # Advisory cost of the *real* (unpadded) work for XLA's scheduler.
    cost = pl.CostEstimate(
        flops=2 * B * (1 * HIDDEN + HIDDEN * HIDDEN + HIDDEN * 1),
        transcendentals=0,
        bytes_accessed=4 * (2 * B + HIDDEN * HIDDEN + 3 * HIDDEN + 1),
    )

    out = pl.pallas_call(
        _mlp_kernel,
        out_shape=jax.ShapeDtypeStruct((1, B_pad), jnp.float32),
        grid=grid,
        in_specs=[
            pl.BlockSpec((1, BT), lambda i: (0, i)),                 # x row tile
            pl.BlockSpec((HIDDEN_PAD, 1), const2),                   # w1 column
            pl.BlockSpec((HIDDEN_PAD, 1), const2),                   # b1 column
            pl.BlockSpec((HIDDEN_PAD, HIDDEN_PAD), const2),          # W2^T
            pl.BlockSpec((HIDDEN_PAD, 1), const2),                   # b2 column
            pl.BlockSpec((HIDDEN_PAD, 1), const2),                   # w3 column
            pl.BlockSpec(memory_space=pltpu.MemorySpace.SMEM),       # b3 scalar
        ],
        out_specs=pl.BlockSpec((1, BT), lambda i: (0, i)),
        compiler_params=pltpu.CompilerParams(
            dimension_semantics=("parallel",)),   # v7x: shard batch over both TCs
        cost_estimate=cost,
    )(x_row, w1, b1, w2t, b2, w3, b3)
    return out.reshape(B_pad, 1)[:B]


def init_params(key):
    """Deterministic init mirroring PyTorch nn.Linear (stored as (in, out))."""
    k1, k2, k3, k4, k5, k6 = jax.random.split(key, 6)

    def uniform(k, shape, fan_in):
        bound = 1.0 / jnp.sqrt(fan_in)
        return jax.random.uniform(k, shape, jnp.float32, -bound, bound)

    return {
        "w1": uniform(k1, (1, HIDDEN), 1.0),        # Linear(1, 40).weight.T
        "b1": uniform(k2, (1, HIDDEN), 1.0),        # Linear(1, 40).bias
        "w2": uniform(k3, (HIDDEN, HIDDEN), 40.0),  # Linear(40, 40).weight.T
        "b2": uniform(k4, (1, HIDDEN), 40.0),       # Linear(40, 40).bias
        "w3": uniform(k5, (HIDDEN, 1), 40.0),       # Linear(40, 1).weight.T
        "b3": uniform(k6, (1, 1), 40.0),            # Linear(40, 1).bias
    }


def _reference_forward(x, p, matmul_dtype=jnp.float32):
    h1 = jnp.maximum(x @ p["w1"] + p["b1"], 0.0)
    h2 = jnp.dot(h1.astype(matmul_dtype), p["w2"].astype(matmul_dtype),
                 preferred_element_type=jnp.float32) + p["b2"]
    h2 = jnp.maximum(h2, 0.0)
    return h2 @ p["w3"] + p["b3"]


if __name__ == "__main__":
    key = jax.random.PRNGKey(0)
    pkey, xkey, xkey2 = jax.random.split(key, 3)
    params = init_params(pkey)

    # 1) Small batch, f32-operand MXU path: exact check vs f32 reference.
    B = 8
    x = jax.random.uniform(xkey, (B, 1), jnp.float32, -3.14159, 3.14159)
    out_f32 = jax.block_until_ready(
        sine_model_forward(x, params, matmul_dtype=jnp.float32))
    ref_f32 = _reference_forward(x, params)
    assert out_f32.shape == (B, 1)
    assert jnp.allclose(out_f32, ref_f32, atol=1e-5, rtol=1e-5)

    # 2) Default bf16-operand MXU fast path: compare against a reference that
    #    also uses bf16 operands with f32 accumulation.
    out_bf16 = jax.block_until_ready(sine_model_forward(x, params))
    ref_bf16 = _reference_forward(x, params, matmul_dtype=jnp.bfloat16)
    assert out_bf16.shape == (B, 1)
    assert jnp.allclose(out_bf16, ref_bf16, atol=2e-3, rtol=2e-3)
    assert jnp.allclose(out_bf16, ref_f32, atol=1e-1, rtol=1e-1)  # loose sanity

    # 3) Multi-tile + batch-padding path: B=300 with a 256-lane tile cap
    #    -> grid of 2 (also exercises the >=2-step v7x sharding path).
    B2 = 300
    x2 = jax.random.uniform(xkey2, (B2, 1), jnp.float32, -3.14159, 3.14159)
    out2 = jax.block_until_ready(
        sine_model_forward(x2, params, block_batch=256, matmul_dtype=jnp.float32))
    ref2 = _reference_forward(x2, params)
    assert out2.shape == (B2, 1)
    assert jnp.allclose(out2, ref2, atol=1e-5, rtol=1e-5)

    print("KERNEL_OK")
</pallas_src>

<mosaic_0001>
module attributes {stable_mosaic.version = 11 : i64} {
  func.func @_mlp_kernel(%arg0: i32, %arg1: memref<1x128xf32, #tpu.memory_space<vmem>>, %arg2: memref<48x1xf32, #tpu.memory_space<vmem>>, %arg3: memref<48x1xf32, #tpu.memory_space<vmem>>, %arg4: memref<48x48xf32, #tpu.memory_space<vmem>>, %arg5: memref<48x1xf32, #tpu.memory_space<vmem>>, %arg6: memref<48x1xf32, #tpu.memory_space<vmem>>, %arg7: memref<1x1xf32, #tpu.memory_space<smem>>, %arg8: memref<1x128xf32, #tpu.memory_space<vmem>>) attributes {dimension_semantics = [#tpu.dimension_semantics<parallel>], iteration_bounds = array<i64: 1>, scalar_prefetch = 0 : i64, scratch_operands = 0 : i64, tpu.core_type = #tpu.core_type<tc>, window_params = [{transform_indices = @transform_0, window_bounds = array<i64: 1, 128>}, {pipeline_mode = #tpu.pipeline_mode<synchronous>, transform_indices = @transform_1, window_bounds = array<i64: 48, 1>}, {pipeline_mode = #tpu.pipeline_mode<synchronous>, transform_indices = @transform_2, window_bounds = array<i64: 48, 1>}, {pipeline_mode = #tpu.pipeline_mode<synchronous>, transform_indices = @transform_3, window_bounds = array<i64: 48, 48>}, {pipeline_mode = #tpu.pipeline_mode<synchronous>, transform_indices = @transform_4, window_bounds = array<i64: 48, 1>}, {pipeline_mode = #tpu.pipeline_mode<synchronous>, transform_indices = @transform_5, window_bounds = array<i64: 48, 1>}, {transform_indices = @transform_6, window_bounds = array<i64: 1, 1>}, {transform_indices = @transform_7, window_bounds = array<i64: 1, 128>}]} {
    %c0 = arith.constant 0 : index
    %c0_0 = arith.constant 0 : index
    %0 = vector.load %arg1[%c0, %c0_0] : memref<1x128xf32, #tpu.memory_space<vmem>>, vector<1x128xf32>
    %c0_1 = arith.constant 0 : index
    %c0_2 = arith.constant 0 : index
    %1 = vector.load %arg2[%c0_1, %c0_2] : memref<48x1xf32, #tpu.memory_space<vmem>>, vector<48x1xf32>
    %2 = vector.broadcast %1 : vector<48x1xf32> to vector<48x128xf32>
    %3 = vector.broadcast %0 : vector<1x128xf32> to vector<48x128xf32>
    %4 = arith.mulf %2, %3 : vector<48x128xf32>
    %c0_3 = arith.constant 0 : index
    %c0_4 = arith.constant 0 : index
    %5 = vector.load %arg3[%c0_3, %c0_4] : memref<48x1xf32, #tpu.memory_space<vmem>>, vector<48x1xf32>
    %6 = vector.broadcast %5 : vector<48x1xf32> to vector<48x128xf32>
    %7 = arith.addf %4, %6 : vector<48x128xf32>
    %cst = arith.constant 0.000000e+00 : f32
    %8 = vector.broadcast %cst : f32 to vector<48x128xf32>
    %9 = arith.maximumf %7, %8 : vector<48x128xf32>
    %c0_5 = arith.constant 0 : index
    %c0_6 = arith.constant 0 : index
    %10 = vector.load %arg4[%c0_5, %c0_6] : memref<48x48xf32, #tpu.memory_space<vmem>>, vector<48x48xf32>
    %cst_7 = arith.constant dense<0.000000e+00> : vector<48x128xf32>
    %11 = tpu.matmul %10, %9, %cst_7 {dimension_numbers = #tpu.dot_dimension_numbers<[1], [0], [0], [1], [0, 0, 1, 1], [], []>} : vector<48x48xf32>, vector<48x128xf32>, vector<48x128xf32> -> vector<48x128xf32>
    %c0_8 = arith.constant 0 : index
    %c0_9 = arith.constant 0 : index
    %12 = vector.load %arg5[%c0_8, %c0_9] : memref<48x1xf32, #tpu.memory_space<vmem>>, vector<48x1xf32>
    %13 = vector.broadcast %12 : vector<48x1xf32> to vector<48x128xf32>
    %14 = arith.addf %11, %13 : vector<48x128xf32>
    %cst_10 = arith.constant 0.000000e+00 : f32
    %15 = vector.broadcast %cst_10 : f32 to vector<48x128xf32>
    %16 = arith.maximumf %14, %15 : vector<48x128xf32>
    %c0_11 = arith.constant 0 : index
    %c0_12 = arith.constant 0 : index
    %17 = vector.load %arg6[%c0_11, %c0_12] : memref<48x1xf32, #tpu.memory_space<vmem>>, vector<48x1xf32>
    %18 = vector.broadcast %17 : vector<48x1xf32> to vector<48x128xf32>
    %19 = arith.mulf %16, %18 : vector<48x128xf32>
    %cst_13 = arith.constant dense<0.000000e+00> : vector<128xf32>
    %20 = vector.multi_reduction <add>, %19, %cst_13 [0] : vector<48x128xf32> to vector<128xf32>
    %21 = vector.shape_cast %20 : vector<128xf32> to vector<1x128xf32>
    %c0_14 = arith.constant 0 : index
    %c0_15 = arith.constant 0 : index
    %22 = memref.load %arg7[%c0_14, %c0_15] : memref<1x1xf32, #tpu.memory_space<smem>>
    %23 = vector.broadcast %22 : f32 to vector<1x128xf32>
    %24 = arith.addf %21, %23 : vector<1x128xf32>
    %c0_16 = arith.constant 0 : index
    %c0_17 = arith.constant 0 : index
    %25 = vector.load %arg8[%c0_16, %c0_17] : memref<1x128xf32, #tpu.memory_space<vmem>>, vector<1x128xf32>
    tpu.vector_store %arg8[%c0_16, %c0_17], %24 {strides = array<i32>} : memref<1x128xf32, #tpu.memory_space<vmem>>, vector<1x128xf32>,
    return
  }
  func.func @transform_0(%arg0: i32) -> (i32, i32) {
    %c0_i32 = arith.constant 0 : i32
    %c0_i32_0 = arith.constant 0 : i32
    return %c0_i32, %arg0 : i32, i32
  }
  func.func @transform_1(%arg0: i32) -> (i32, i32) {
    %c0_i32 = arith.constant 0 : i32
    %c0_i32_0 = arith.constant 0 : i32
    %c0_i32_1 = arith.constant 0 : i32
    return %c0_i32, %c0_i32_0 : i32, i32
  }
  func.func @transform_2(%arg0: i32) -> (i32, i32) {
    %c0_i32 = arith.constant 0 : i32
    %c0_i32_0 = arith.constant 0 : i32
    %c0_i32_1 = arith.constant 0 : i32
    return %c0_i32, %c0_i32_0 : i32, i32
  }
  func.func @transform_3(%arg0: i32) -> (i32, i32) {
    %c0_i32 = arith.constant 0 : i32
    %c0_i32_0 = arith.constant 0 : i32
    %c0_i32_1 = arith.constant 0 : i32
    return %c0_i32, %c0_i32_0 : i32, i32
  }
  func.func @transform_4(%arg0: i32) -> (i32, i32) {
    %c0_i32 = arith.constant 0 : i32
    %c0_i32_0 = arith.constant 0 : i32
    %c0_i32_1 = arith.constant 0 : i32
    return %c0_i32, %c0_i32_0 : i32, i32
  }
  func.func @transform_5(%arg0: i32) -> (i32, i32) {
    %c0_i32 = arith.constant 0 : i32
    %c0_i32_0 = arith.constant 0 : i32
    %c0_i32_1 = arith.constant 0 : i32
    return %c0_i32, %c0_i32_0 : i32, i32
  }
  func.func @transform_6(%arg0: i32) -> (i32, i32) {
    %c0_i32 = arith.constant 0 : i32
    %c0_i32_0 = arith.constant 0 : i32
    %c0_i32_1 = arith.constant 0 : i32
    return %c0_i32, %c0_i32_0 : i32, i32
  }
  func.func @transform_7(%arg0: i32) -> (i32, i32) {
    %c0_i32 = arith.constant 0 : i32
    %c0_i32_0 = arith.constant 0 : i32
    return %c0_i32, %arg0 : i32, i32
  }
}

</mosaic_0001>

<llo_original>
// kernel: tpu_custom_call.1
$region0: #{tpu_custom_call.1}
  #allocation0 [shape = 'u32[]', space=smem, size = 0x4, offset = 0x4, fixed_abs, tag = 'smem constant byte address 0x4 - core index']
  #allocation1 [shape = 'u32[144,128]{1,0:T(1,128)}', space=vmem, size = 0x12000, scoped, tag = 'internal scratch']
  #allocation2 [shape = 'f32[1,1]{1,0:T(1,128)S(6)}', space=smem, size = 0x200, scoped, tag = 'scoped memory for tpu_custom_call.1']
  %s0 = inlined_call_operand.vmem [shape: f32[1,128], index: 0, kind: input, shape index: {}]
  %s1 = inlined_call_operand.vmem [shape: f32[48,1], index: 1, kind: input, shape index: {}]
  %s2 = inlined_call_operand.vmem [shape: f32[48,1], index: 2, kind: input, shape index: {}]
  %s3 = inlined_call_operand.vmem [shape: f32[48,48], index: 3, kind: input, shape index: {}]
  %s4 = inlined_call_operand.vmem [shape: f32[48,1], index: 4, kind: input, shape index: {}]
  %s5 = inlined_call_operand.vmem [shape: f32[48,1], index: 5, kind: input, shape index: {}]
  %s6 = inlined_call_operand.<no memory space> [shape: f32[1,1], index: 6, kind: input, shape index: {}]
  %s7 = inlined_call_operand.hbm [shape: f32[1,128], index: 7, kind: output, shape index: {}]
  %s8 = sld [smem:[#allocation0]]
  $region38: #{tpu_custom_call.1} parent=0
    _
  %s10 = ssub.s32 1, %s8
  %s11 = scalar_select 0, %s10, %s8
  %12 = sst [smem:[#allocation2]] %s6
  $region1: #{tpu_custom_call.1} parent=0
    #allocation3 [shape = 'u8[512]{0}', space=vmem, size = 0x400, scoped, tag = 'output window, operand 0, single buffered']
    #allocation4 [shape = 's32[1]{0}', space=sflag, size = 0x4, scoped, tag = 'scoped memory for tpu_custom_call.1']
    %13 = vsyncpa [#allocation4], 0
    // Predicated region
    $region2: #{tpu_custom_call.1} parent=1 // pred_check
      _
    $region3: #{tpu_custom_call.1} parent=1 // pred_check_branch
      %15 = sbr.rel (0) target = $region5
    $region4: #{tpu_custom_call.1} parent=1 // pred_region
      _
    $region5: #{tpu_custom_call.1} parent=1 // pred_fallthru
      _
    // Predicated region
    $region6: #{tpu_custom_call.1} parent=1 // pred_check
      _
    $region7: #{tpu_custom_call.1} parent=1 // pred_check_branch
      %17 = sbr.rel (0) target = $region9
    $region8: #{tpu_custom_call.1} parent=1 // pred_region
      _
    $region9: #{tpu_custom_call.1} parent=1 // pred_fallthru
      _
    // Predicated region
    $region10: #{tpu_custom_call.1} parent=1 // pred_check
      _
    $region11: #{tpu_custom_call.1} parent=1 // pred_check_branch
      %19 = sbr.rel (0) target = $region13
    $region12: #{tpu_custom_call.1} parent=1 // pred_region
      _
    $region13: #{tpu_custom_call.1} parent=1 // pred_fallthru
      _
    // Predicated region
    $region14: #{tpu_custom_call.1} parent=1 // pred_check
      _
    $region15: #{tpu_custom_call.1} parent=1 // pred_check_branch
      %21 = sbr.rel (0) target = $region17
    $region16: #{tpu_custom_call.1} parent=1 // pred_region
      _
    $region17: #{tpu_custom_call.1} parent=1 // pred_fallthru
      _
    // Predicated region
    $region18: #{tpu_custom_call.1} parent=1 // pred_check
      _
    $region19: #{tpu_custom_call.1} parent=1 // pred_check_branch
      %23 = sbr.rel (0) target = $region21
    $region20: #{tpu_custom_call.1} parent=1 // pred_region
      _
    $region21: #{tpu_custom_call.1} parent=1 // pred_fallthru
      _
    // Predicated region
    $region22: #{tpu_custom_call.1} parent=1 // pred_check
      _
    $region23: #{tpu_custom_call.1} parent=1 // pred_check_branch
      %25 = sbr.rel (0) target = $region25
    $region24: #{tpu_custom_call.1} parent=1 // pred_region
      _
    $region25: #{tpu_custom_call.1} parent=1 // pred_fallthru
      _
    // Predicated region
    $region26: #{tpu_custom_call.1} parent=1 // pred_check
      _
    $region27: #{tpu_custom_call.1} parent=1 // pred_check_branch
      %27 = sbr.rel (0) target = $region29
    $region28: #{tpu_custom_call.1} parent=1 // pred_region
      _
    $region29: #{tpu_custom_call.1} parent=1 // pred_fallthru
      _
    %v28 = vld [vmem:[%s0] sm:$0x1]
    %v29 = vld [vmem:[%s1] sm:$0xff]
    %v30 = vld [vmem:[%s1 + $0x8] sm:$0xff]
    %v31 = vld [vmem:[%s1 + $0x10] sm:$0xff]
    %v32 = vld [vmem:[%s1 + $0x18] sm:$0xff]
    %v33 = vld [vmem:[%s1 + $0x20] sm:$0xff]
    %v34 = vld [vmem:[%s1 + $0x28] sm:$0xff]
    %36 = vset.pattern.permute.xlu0 0
    %37 = vperm.xlu0 %36, %v29
    %v38 = vpop.permute.xlu0 %37
    %41 = vset.pattern.permute.xlu0 0
    %42 = vperm.xlu0 %41, %v30
    %v43 = vpop.permute.xlu0 %42
    %46 = vset.pattern.permute.xlu0 0
    %47 = vperm.xlu0 %46, %v31
    %v48 = vpop.permute.xlu0 %47
    %51 = vset.pattern.permute.xlu0 0
    %52 = vperm.xlu0 %51, %v32
    %v53 = vpop.permute.xlu0 %52
    %56 = vset.pattern.permute.xlu0 0
    %57 = vperm.xlu0 %56, %v33
    %v58 = vpop.permute.xlu0 %57
    %61 = vset.pattern.permute.xlu0 0
    %62 = vperm.xlu0 %61, %v34
    %v63 = vpop.permute.xlu0 %62
    %v66 = vlaneseq
    %v67 = vshrl.u32 %v66, 7
    %v68 = vsub.s32 0, %v67
    %v69 = vrot.slane %v28, %v68
    %v71 = vmul.f32 %v38, %v69
    %v72 = vmul.f32 %v43, %v69
    %v73 = vmul.f32 %v48, %v69
    %v74 = vmul.f32 %v53, %v69
    %v75 = vmul.f32 %v58, %v69
    %v76 = vmul.f32 %v63, %v69
    %v77 = vld [vmem:[%s2] sm:$0xff]
    %v78 = vld [vmem:[%s2 + $0x8] sm:$0xff]
    %v79 = vld [vmem:[%s2 + $0x10] sm:$0xff]
    %v80 = vld [vmem:[%s2 + $0x18] sm:$0xff]
    %v81 = vld [vmem:[%s2 + $0x20] sm:$0xff]
    %v82 = vld [vmem:[%s2 + $0x28] sm:$0xff]
    %84 = vset.pattern.permute.xlu0 0
    %85 = vperm.xlu0 %84, %v77
    %v86 = vpop.permute.xlu0 %85
    %89 = vset.pattern.permute.xlu0 0
    %90 = vperm.xlu0 %89, %v78
    %v91 = vpop.permute.xlu0 %90
    %94 = vset.pattern.permute.xlu0 0
    %95 = vperm.xlu0 %94, %v79
    %v96 = vpop.permute.xlu0 %95
    %99 = vset.pattern.permute.xlu0 0
    %100 = vperm.xlu0 %99, %v80
    %v101 = vpop.permute.xlu0 %100
    %104 = vset.pattern.permute.xlu0 0
    %105 = vperm.xlu0 %104, %v81
    %v106 = vpop.permute.xlu0 %105
    %109 = vset.pattern.permute.xlu0 0
    %110 = vperm.xlu0 %109, %v82
    %v111 = vpop.permute.xlu0 %110
    %v113 = vadd.f32 %v71, %v86
    %v114 = vadd.f32 %v72, %v91
    %v115 = vadd.f32 %v73, %v96
    %v116 = vadd.f32 %v74, %v101
    %v117 = vadd.f32 %v75, %v106
    %v118 = vadd.f32 %v76, %v111
    %v119 = vmax.f32 %v113, 0.0
    %v120 = vmax.f32 %v114, 0.0
    %v121 = vmax.f32 %v115, 0.0
    %v122 = vmax.f32 %v116, 0.0
    %v123 = vmax.f32 %v117, 0.0
    %v124 = vmax.f32 %v118, 0.0
    %v125 = vld [vmem:[%s3] sm:$0xff]
    %v126 = vld [vmem:[%s3 + $0x8] sm:$0xff]
    %v127 = vld [vmem:[%s3 + $0x10] sm:$0xff]
    %v128 = vld [vmem:[%s3 + $0x18] sm:$0xff]
    %v129 = vld [vmem:[%s3 + $0x20] sm:$0xff]
    %v130 = vld [vmem:[%s3 + $0x28] sm:$0xff]
    %v131 = vld [vmem:[%s4] sm:$0xff]
    %v132 = vld [vmem:[%s4 + $0x8] sm:$0xff]
    %v133 = vld [vmem:[%s4 + $0x10] sm:$0xff]
    %v134 = vld [vmem:[%s4 + $0x18] sm:$0xff]
    %v135 = vld [vmem:[%s4 + $0x20] sm:$0xff]
    %v136 = vld [vmem:[%s4 + $0x28] sm:$0xff]
    %138 = vset.pattern.permute.xlu0 0
    %139 = vperm.xlu0 %138, %v131
    %v140 = vpop.permute.xlu0 %139
    %143 = vset.pattern.permute.xlu0 0
    %144 = vperm.xlu0 %143, %v132
    %v145 = vpop.permute.xlu0 %144
    %148 = vset.pattern.permute.xlu0 0
    %149 = vperm.xlu0 %148, %v133
    %v150 = vpop.permute.xlu0 %149
    %153 = vset.pattern.permute.xlu0 0
    %154 = vperm.xlu0 %153, %v134
    %v155 = vpop.permute.xlu0 %154
    %158 = vset.pattern.permute.xlu0 0
    %159 = vperm.xlu0 %158, %v135
    %v160 = vpop.permute.xlu0 %159
    %163 = vset.pattern.permute.xlu0 0
    %164 = vperm.xlu0 %163, %v136
    %v165 = vpop.permute.xlu0 %164
    %vm167 = vcmask 392192
    %v169 = vsel %vm167, %v125, 0
    %v172 = vsel %vm167, %v126, 0
    %v175 = vsel %vm167, %v127, 0
    %v178 = vsel %vm167, %v128, 0
    %v181 = vsel %vm167, %v129, 0
    %v184 = vsel %vm167, %v130, 0
    %186 = vmatprep.subr.mxu0 0.0
    %187 = vmatpush1.msra.mxu0 %v119
    %188 = vmatprep.subr.mxu0 0.0
    %189 = vmatpush1.msra.mxu0 %v120
    %190 = vmatprep.subr.mxu0 0.0
    %191 = vmatpush1.msra.mxu0 %v121
    %192 = vmatprep.subr.mxu0 0.0
    %193 = vmatpush1.msra.mxu0 %v122
    %194 = vmatprep.subr.mxu0 0.0
    %195 = vmatpush1.msra.mxu0 %v123
    %196 = vmatprep.subr.mxu0 0.0
    %197 = vmatpush1.msra.mxu0 %v124
    %198 = vmatprep.subr.mxu0 0.0
    %199 = vmatpush1.msra.mxu0 0.0
    %200 = vmatprep.subr.mxu0 0.0
    %201 = vmatpush1.msra.mxu0 0.0
    %202 = vmatprep.subr.mxu0 0.0
    %203 = vmatpush1.msra.mxu0 0.0
    %204 = vmatprep.subr.mxu0 0.0
    %205 = vmatpush1.msra.mxu0 0.0
    %206 = vmatprep.subr.mxu0 0.0
    %207 = vmatpush1.msra.mxu0 0.0
    %208 = vmatprep.subr.mxu0 0.0
    %209 = vmatpush1.msra.mxu0 0.0
    %210 = vmatprep.subr.mxu0 0.0
    %211 = vmatpush1.msra.mxu0 0.0
    %212 = vmatprep.subr.mxu0 0.0
    %213 = vmatpush1.msra.mxu0 0.0
    %214 = vmatprep.subr.mxu0 0.0
    %215 = vmatpush1.msra.mxu0 0.0
    %216 = vmatprep.subr.mxu0 0.0
    %217 = vmatpush1.msra.mxu0 0.0
    %218 = vmatprep.subr.mxu0 0.0
    %219 = vmatpush1.msra.mxu0 0.0
    %220 = vmatprep.subr.mxu0 0.0
    %221 = vmatpush1.msra.mxu0 0.0
    %222 = vmatprep.subr.mxu0 0.0
    %223 = vmatpush1.msra.mxu0 0.0
    %224 = vmatprep.subr.mxu0 0.0
    %225 = vmatpush1.msra.mxu0 0.0
    %226 = vmatprep.subr.mxu0 0.0
    %227 = vmatpush1.msra.mxu0 0.0
    %228 = vmatprep.subr.mxu0 0.0
    %229 = vmatpush1.msra.mxu0 0.0
    %230 = vmatprep.subr.mxu0 0.0
    %231 = vmatpush1.msra.mxu0 0.0
    %232 = vmatprep.subr.mxu0 0.0
    %233 = vmatpush1.msra.mxu0 0.0
    %234 = vmatprep.subr.mxu0 0.0
    %235 = vmatpush1.msra.mxu0 0.0
    %236 = vmatprep.subr.mxu0 0.0
    %237 = vmatpush1.msra.mxu0 0.0
    %238 = vmatprep.subr.mxu0 0.0
    %239 = vmatpush1.msra.mxu0 0.0
    %240 = vmatprep.subr.mxu0 0.0
    %241 = vmatpush1.msra.mxu0 0.0
    %242 = vmatprep.subr.mxu0 0.0
    %243 = vmatpush1.msra.mxu0 0.0
    %244 = vmatprep.subr.mxu0 0.0
    %245 = vmatpush1.msra.mxu0 0.0
    %246 = vmatprep.subr.mxu0 0.0
    %247 = vmatpush1.msra.mxu0 0.0
    %248 = vmatprep.subr.mxu0 0.0
    %249 = vmatpush1.msra.mxu0 0.0
    %250 = vmatprep.mubr.f32.mxu0 0.0
    %251 = vmatmul.mubr.f32.gmra.mrb[0].mxu0 %v169
    %v252 = vpop.f32.mrb[0].mxu0
    %v253 = vadd.f32 %v140, %v252
    %v254 = vpop.f32.mrb[0].mxu0
    %255 = vmatprep.mubr.f32.mxu0 0.0
    %256 = vmatmul.mubr.f32.gmra.mrb[0].mxu0 %v172
    %v257 = vpop.f32.mrb[0].mxu0
    %v258 = vadd.f32 %v145, %v257
    %v259 = vpop.f32.mrb[0].mxu0
    %260 = vmatprep.mubr.f32.mxu0 0.0
    %261 = vmatmul.mubr.f32.gmra.mrb[0].mxu0 %v175
    %v262 = vpop.f32.mrb[0].mxu0
    %v263 = vadd.f32 %v150, %v262
    %v264 = vpop.f32.mrb[0].mxu0
    %265 = vmatprep.mubr.f32.mxu0 0.0
    %266 = vmatmul.mubr.f32.gmra.mrb[0].mxu0 %v178
    %v267 = vpop.f32.mrb[0].mxu0
    %v268 = vadd.f32 %v155, %v267
    %v269 = vpop.f32.mrb[0].mxu0
    %270 = vmatprep.mubr.f32.mxu0 0.0
    %271 = vmatmul.mubr.f32.gmra.mrb[0].mxu0 %v181
    %v272 = vpop.f32.mrb[0].mxu0
    %v273 = vadd.f32 %v160, %v272
    %v274 = vpop.f32.mrb[0].mxu0
    %275 = vmatprep.mubr.f32.mxu0 0.0
    %276 = vmatmul.mubr.f32.gmra.mrb[0].mxu0 %v184
    %v277 = vpop.f32.mrb[0].mxu0
    %v278 = vadd.f32 %v165, %v277
    %v279 = vpop.f32.mrb[0].mxu0
    %280 = vdwg.mxu0
    %v281 = vmax.f32 %v253, 0.0
    %v282 = vmax.f32 %v258, 0.0
    %v283 = vmax.f32 %v263, 0.0
    %v284 = vmax.f32 %v268, 0.0
    %v285 = vmax.f32 %v273, 0.0
    %v286 = vmax.f32 %v278, 0.0
    %v287 = vld [vmem:[%s5] sm:$0xff]
    %v288 = vld [vmem:[%s5 + $0x8] sm:$0xff]
    %v289 = vld [vmem:[%s5 + $0x10] sm:$0xff]
    %v290 = vld [vmem:[%s5 + $0x18] sm:$0xff]
    %v291 = vld [vmem:[%s5 + $0x20] sm:$0xff]
    %v292 = vld [vmem:[%s5 + $0x28] sm:$0xff]
    %294 = vset.pattern.permute.xlu0 0
    %295 = vperm.xlu0 %294, %v287
    %v296 = vpop.permute.xlu0 %295
    %299 = vset.pattern.permute.xlu0 0
    %300 = vperm.xlu0 %299, %v288
    %v301 = vpop.permute.xlu0 %300
    %304 = vset.pattern.permute.xlu0 0
    %305 = vperm.xlu0 %304, %v289
    %v306 = vpop.permute.xlu0 %305
    %309 = vset.pattern.permute.xlu0 0
    %310 = vperm.xlu0 %309, %v290
    %v311 = vpop.permute.xlu0 %310
    %314 = vset.pattern.permute.xlu0 0
    %315 = vperm.xlu0 %314, %v291
    %v316 = vpop.permute.xlu0 %315
    %319 = vset.pattern.permute.xlu0 0
    %320 = vperm.xlu0 %319, %v292
    %v321 = vpop.permute.xlu0 %320
    %v323 = vmul.f32 %v281, %v296
    %v324 = vmul.f32 %v282, %v301
    %v325 = vmul.f32 %v283, %v306
    %v326 = vmul.f32 %v284, %v311
    %v327 = vmul.f32 %v285, %v316
    %v328 = vmul.f32 %v286, %v321
    %v329 = vadd.f32 %v323, %v324
    %v330 = vadd.f32 %v329, %v325
    %v331 = vadd.f32 %v330, %v326
    %v332 = vadd.f32 %v331, %v327
    %v333 = vadd.f32 %v332, %v328
    %v334 = vrot.slane %v333, 4
    %v335 = vadd.f32 %v333, %v334
    %v336 = vrot.slane %v335, 2
    %v337 = vadd.f32 %v335, %v336
    %v338 = vrot.slane %v337, 1
    %v339 = vadd.f32 %v337, %v338
    %s340 = sld [smem:[#allocation2]]
    %v341 = vstv %s340
    %v342 = vadd.f32 %v339, %v341
    %343 = vst [vmem:[#allocation3] sm:$0x1] %v342
    // Predicated region
    $region30: #{tpu_custom_call.1} parent=1 // pred_check
      _
    $region31: #{tpu_custom_call.1} parent=1 // pred_check_branch
      %345 = sbr.rel (0) target = $region33
    $region32: #{tpu_custom_call.1} parent=1 // pred_region
      %s347 = ssub.s32 16, 16
      %348 = vsyncadd [#allocation4], %s347
      %s350 = sshll.u32 [#allocation3], 4
      %s351 = int_to_ptr.vmem [resolvable:$true] %s350
      %353 = dma.vmem_to_hbm [thread:$0]  %s351, 16, %s7, [#allocation4]
    $region33: #{tpu_custom_call.1} parent=1 // pred_fallthru
      _
    // Predicated region
    $region34: #{tpu_custom_call.1} parent=1 // pred_check
      _
    $region35: #{tpu_custom_call.1} parent=1 // pred_check_branch
      %355 = sbr.rel (0) target = $region37
    $region36: #{tpu_custom_call.1} parent=1 // pred_region
      %356 = dma.done [#allocation4], 16
    $region37: #{tpu_custom_call.1} parent=1 // pred_fallthru
      _
    %357 = vsyncpa [#allocation4], 1

</llo_original>
